<compile_context>
chip_gen: v7x
topology: tpu7x:2x2x1
jax: 0.10.0
libtpu: 0.0.40
codegen_flags: <defaults>
</compile_context>

<pallas_src>
import jax
import jax.numpy as jnp
from jax import lax
from jax.experimental import pallas as pl
from jax.experimental.pallas import tpu as pltpu

LANE = 128
MAX_TILE_ROWS = 8192          # (8192,128) f32 = 4 MiB/block; 2 in x 2 buf = 16 MiB
CHUNK_ROWS = 512              # in-kernel streaming chunk (256 KiB per operand)
VMEM_LIMIT_BYTES = 32 * 1024 * 1024   # works on v5e/v6e/v7x (<= physical on all)


def _fold_to_8x128(d):
    """(r, 128) f32 -> (8, 128) partial sum using only sublane/lane-parallel adds."""
    r = d.shape[0]
    pad = (-r) % 8
    if pad:
        d = jnp.concatenate([d, jnp.zeros((pad, LANE), d.dtype)], axis=0)
    return jnp.sum(d.reshape(-1, 8, LANE), axis=0)


def _make_l1_kernel(rows_valid, tile_rows, steps, chunk_rows):
    """Builds the kernel with all shape parameters baked in statically."""
    n_chunks, rem = divmod(tile_rows, chunk_rows)

    def kernel(x_ref, y_ref, o_ref):
        part = pl.program_id(0)
        step = pl.program_id(1)

        @pl.when(step == 0)
        def _():
            o_ref[...] = jnp.zeros_like(o_ref)

        # Global (unclamped) tile index.  Phantom tiles (odd tile count split
        # across 2 parts) and the ragged last tile contribute zero via the
        # row mask below (their out-of-range VMEM rows are unspecified data).
        tile_idx = part * steps + step
        limit = rows_valid - tile_idx * tile_rows   # valid rows in this tile

        def chunk_partial(r0, size):
            xs = x_ref[pl.ds(r0, size), :].astype(jnp.float32)
            ys = y_ref[pl.ds(r0, size), :].astype(jnp.float32)
            d = jnp.abs(xs - ys)
            rid = lax.broadcasted_iota(jnp.int32, (size, LANE), 0) + r0
            d = jnp.where(rid < limit, d, 0.0)
            return _fold_to_8x128(d)

        acc = jnp.zeros((8, LANE), jnp.float32)
        if n_chunks == 1:
            acc = acc + chunk_partial(0, chunk_rows)
        elif n_chunks > 1:
            def body(c, a):
                r0 = pl.multiple_of(c * chunk_rows, chunk_rows)
                return a + chunk_partial(r0, chunk_rows)
            acc = lax.fori_loop(0, n_chunks, body, acc)
        if rem:
            acc = acc + chunk_partial(n_chunks * chunk_rows, rem)

        o_ref[0, :, :] = o_ref[0, :, :] + acc

    return kernel


def l1_loss(x, y):
    assert x.shape == y.shape, "L1Loss requires matching shapes"
    n = x.size
    out_dtype = x.dtype if jnp.issubdtype(x.dtype, jnp.floating) else jnp.float32
    if n == 0:
        return jnp.full((), jnp.nan, dtype=out_dtype)   # torch mean of empty = nan

    xf = x.reshape(-1)
    yf = y.reshape(-1)
    if n % LANE:
        # TODO(synk): this uncommon path (size not a multiple of 128) still
        # materializes one padded copy per input; allow_input_fusion could
        # fold the pad into the pallas_call operands.  |0-0| = 0 cancels.
        pad = LANE - n % LANE
        xf = jnp.pad(xf, (0, pad))
        yf = jnp.pad(yf, (0, pad))
    rows = xf.size // LANE
    x2 = xf.reshape(rows, LANE)   # free bitcast when n % 128 == 0 (no copy)
    y2 = yf.reshape(rows, LANE)

    tile_rows = rows if rows <= MAX_TILE_ROWS else MAX_TILE_ROWS
    num_tiles = -(-rows // tile_rows)
    # 2-way megacore split only when each core gets >= 4 steps (v7x); on 1-TC
    # chips the extra "parallel" axis is harmless.
    n_parts = 2 if num_tiles >= 8 else 1
    steps = -(-num_tiles // n_parts)
    chunk_rows = min(CHUNK_ROWS, tile_rows)

    kernel = _make_l1_kernel(rows, tile_rows, steps, chunk_rows)

    last_tile = num_tiles - 1
    in_map = lambda p, i: (jnp.minimum(p * steps + i, last_tile), 0)

    partials = pl.pallas_call(
        kernel,
        out_shape=jax.ShapeDtypeStruct((n_parts, 8, LANE), jnp.float32),
        grid_spec=pltpu.PrefetchScalarGridSpec(
            num_scalar_prefetch=0,
            grid=(n_parts, steps),
            in_specs=[
                pl.BlockSpec((tile_rows, LANE), in_map),
                pl.BlockSpec((tile_rows, LANE), in_map),
            ],
            out_specs=pl.BlockSpec((1, 8, LANE), lambda p, i: (p, 0, 0)),
        ),
        compiler_params=pltpu.CompilerParams(
            dimension_semantics=("parallel", "arbitrary"),
            vmem_limit_bytes=VMEM_LIMIT_BYTES,
        ),
    )(x2, y2)

    # Single cross-lane reduce + mean; PyTorch returns a 0-dim tensor.
    return (jnp.sum(partials) / jnp.float32(n)).astype(out_dtype)


if __name__ == "__main__":
    l1 = jax.jit(l1_loss)
    key = jax.random.PRNGKey(0)

    # Primary check: the module's expected small input shape.
    kx, ky = jax.random.split(key)
    x = jax.random.normal(kx, (2, 4, 16, 16), dtype=jnp.float32)
    y = jax.random.normal(ky, (2, 4, 16, 16), dtype=jnp.float32)
    loss = jax.block_until_ready(l1(x, y))
    ref = jnp.mean(jnp.abs(x - y))
    assert jnp.allclose(loss, ref, rtol=1e-6, atol=1e-6), (loss, ref)

    # Non-128-multiple element count (pad fallback path).
    ka, kb = jax.random.split(ky)
    a = jax.random.normal(ka, (3, 5, 17), dtype=jnp.float32)
    b = jax.random.normal(kb, (3, 5, 17), dtype=jnp.float32)
    loss2 = jax.block_until_ready(l1(a, b))
    ref2 = jnp.mean(jnp.abs(a - b))
    assert jnp.allclose(loss2, ref2, rtol=1e-6, atol=1e-6), (loss2, ref2)

    # Multi-tile + ragged-last-tile path (zero-copy, in-kernel row mask).
    kc, kd = jax.random.split(ka)
    c = jax.random.normal(kc, (2, 8397, 128), dtype=jnp.float32)
    d = jax.random.normal(kd, (2, 8397, 128), dtype=jnp.float32)
    loss3 = jax.block_until_ready(l1(c, d))
    ref3 = jnp.mean(jnp.abs(c - d))
    assert jnp.allclose(loss3, ref3, rtol=1e-4, atol=1e-6), (loss3, ref3)

    # Megacore split + phantom-tile clamp path (9 tiles -> 2 parts x 5 steps).
    ke, kf = jax.random.split(kc)
    e = jax.random.normal(ke, (65548, 128), dtype=jnp.float32)
    f = jax.random.normal(kf, (65548, 128), dtype=jnp.float32)
    loss4 = jax.block_until_ready(l1(e, f))
    ref4 = jnp.mean(jnp.abs(e - f))
    assert jnp.allclose(loss4, ref4, rtol=1e-4, atol=1e-6), (loss4, ref4)

    print("KERNEL_OK")
</pallas_src>

<mosaic_0001>
module attributes {stable_mosaic.version = 11 : i64} {
  func.func @kernel(%arg0: i32, %arg1: i32, %arg2: memref<16x128xf32, #tpu.memory_space<vmem>>, %arg3: memref<16x128xf32, #tpu.memory_space<vmem>>, %arg4: memref<1x8x128xf32, #tpu.memory_space<vmem>>) attributes {dimension_semantics = [#tpu.dimension_semantics<parallel>, #tpu.dimension_semantics<arbitrary>], iteration_bounds = array<i64: 1, 1>, scalar_prefetch = 0 : i64, scratch_operands = 0 : i64, tpu.core_type = #tpu.core_type<tc>, window_params = [{transform_indices = @transform_0, window_bounds = array<i64: 16, 128>}, {transform_indices = @transform_1, window_bounds = array<i64: 16, 128>}, {transform_indices = @transform_2, window_bounds = array<i64: 1, 8, 128>}]} {
    %c0_i32 = arith.constant 0 : i32
    %0 = arith.cmpi eq, %arg1, %c0_i32 : i32
    %1 = arith.extui %0 : i1 to i32
    %c0_i32_0 = arith.constant 0 : i32
    %2 = arith.cmpi ne, %1, %c0_i32_0 : i32
    scf.if %2 {
      %cst_14 = arith.constant 0.000000e+00 : f32
      %28 = vector.broadcast %cst_14 : f32 to vector<1x8x128xf32>
      %c0_15 = arith.constant 0 : index
      %c0_16 = arith.constant 0 : index
      %c0_17 = arith.constant 0 : index
      %29 = vector.load %arg4[%c0_15, %c0_16, %c0_17] : memref<1x8x128xf32, #tpu.memory_space<vmem>>, vector<1x8x128xf32>
      tpu.vector_store %arg4[%c0_15, %c0_16, %c0_17], %28 {strides = array<i32>} : memref<1x8x128xf32, #tpu.memory_space<vmem>>, vector<1x8x128xf32>,
    } else {
    }
    %c1_i32 = arith.constant 1 : i32
    %3 = arith.muli %arg0, %c1_i32 : i32
    %4 = arith.addi %3, %arg1 : i32
    %c16_i32 = arith.constant 16 : i32
    %5 = arith.muli %4, %c16_i32 : i32
    %c16_i32_1 = arith.constant 16 : i32
    %6 = arith.subi %c16_i32_1, %5 : i32
    %cst = arith.constant 0.000000e+00 : f32
    %7 = vector.broadcast %cst : f32 to vector<8x128xf32>
    %c0 = arith.constant 0 : index
    %c0_2 = arith.constant 0 : index
    %8 = vector.load %arg2[%c0, %c0_2] : memref<16x128xf32, #tpu.memory_space<vmem>>, vector<16x128xf32>
    %c0_3 = arith.constant 0 : index
    %c0_4 = arith.constant 0 : index
    %9 = vector.load %arg3[%c0_3, %c0_4] : memref<16x128xf32, #tpu.memory_space<vmem>>, vector<16x128xf32>
    %10 = arith.subf %8, %9 : vector<16x128xf32>
    %11 = math.absf %10 : vector<16x128xf32>
    %12 = tpu.iota {dimensions = array<i32: 0>} : vector<16x128xi32>
    %c0_i32_5 = arith.constant 0 : i32
    %13 = vector.broadcast %c0_i32_5 : i32 to vector<16x128xi32>
    %14 = arith.addi %12, %13 : vector<16x128xi32>
    %15 = vector.broadcast %6 : i32 to vector<16x128xi32>
    %16 = arith.cmpi slt, %14, %15 : vector<16x128xi32>
    %cst_6 = arith.constant 0.000000e+00 : f32
    %17 = vector.broadcast %cst_6 : f32 to vector<16x128xf32>
    %18 = arith.select %16, %11, %17 : vector<16x128xi1>, vector<16x128xf32>
    %19 = vector.shape_cast %18 : vector<16x128xf32> to vector<2x8x128xf32>
    %cst_7 = arith.constant dense<0.000000e+00> : vector<8x128xf32>
    %20 = vector.multi_reduction <add>, %19, %cst_7 [0] : vector<2x8x128xf32> to vector<8x128xf32>
    %21 = arith.addf %7, %20 : vector<8x128xf32>
    %c0_8 = arith.constant 0 : index
    %c0_9 = arith.constant 0 : index
    %c0_10 = arith.constant 0 : index
    %22 = vector.load %arg4[%c0_8, %c0_9, %c0_10] : memref<1x8x128xf32, #tpu.memory_space<vmem>>, vector<1x8x128xf32>
    %23 = vector.shape_cast %22 : vector<1x8x128xf32> to vector<8x128xf32>
    %24 = arith.addf %23, %21 : vector<8x128xf32>
    %c0_11 = arith.constant 0 : index
    %c0_12 = arith.constant 0 : index
    %c0_13 = arith.constant 0 : index
    %25 = vector.load %arg4[%c0_11, %c0_12, %c0_13] : memref<1x8x128xf32, #tpu.memory_space<vmem>>, vector<1x8x128xf32>
    %26 = vector.shape_cast %25 : vector<1x8x128xf32> to vector<8x128xf32>
    %27 = vector.shape_cast %24 : vector<8x128xf32> to vector<1x8x128xf32>
    tpu.vector_store %arg4[%c0_11, %c0_12, %c0_13], %27 {strides = array<i32>} : memref<1x8x128xf32, #tpu.memory_space<vmem>>, vector<1x8x128xf32>,
    return
  }
  func.func @transform_0(%arg0: i32, %arg1: i32) -> (i32, i32) {
    %c1_i32 = arith.constant 1 : i32
    %0 = arith.muli %arg0, %c1_i32 : i32
    %1 = arith.addi %0, %arg1 : i32
    %c0_i32 = arith.constant 0 : i32
    %2 = arith.minsi %1, %c0_i32 : i32
    %c0_i32_0 = arith.constant 0 : i32
    %c0_i32_1 = arith.constant 0 : i32
    return %2, %c0_i32_0 : i32, i32
  }
  func.func @transform_1(%arg0: i32, %arg1: i32) -> (i32, i32) {
    %c1_i32 = arith.constant 1 : i32
    %0 = arith.muli %arg0, %c1_i32 : i32
    %1 = arith.addi %0, %arg1 : i32
    %c0_i32 = arith.constant 0 : i32
    %2 = arith.minsi %1, %c0_i32 : i32
    %c0_i32_0 = arith.constant 0 : i32
    %c0_i32_1 = arith.constant 0 : i32
    return %2, %c0_i32_0 : i32, i32
  }
  func.func @transform_2(%arg0: i32, %arg1: i32) -> (i32, i32, i32) {
    %c0_i32 = arith.constant 0 : i32
    %c0_i32_0 = arith.constant 0 : i32
    %c0_i32_1 = arith.constant 0 : i32
    return %arg0, %c0_i32, %c0_i32_0 : i32, i32, i32
  }
}

</mosaic_0001>

<llo_original>
// kernel: l1_loss.1
$region0: #{l1_loss.1}
  #allocation0 [shape = 'u32[]', space=smem, size = 0x4, offset = 0x4, fixed_abs, tag = 'smem constant byte address 0x4 - core index']
  #allocation1 [shape = 'u32[144,128]{1,0:T(1,128)}', space=vmem, size = 0x12000, scoped, tag = 'internal scratch']
  %s0 = inlined_call_operand.vmem [shape: f32[16,128], index: 0, kind: input, shape index: {}]
  %s1 = inlined_call_operand.vmem [shape: f32[16,128], index: 1, kind: input, shape index: {}]
  %s2 = inlined_call_operand.vmem [shape: f32[1,8,128], index: 2, kind: output, shape index: {}]
  %s3 = sld [smem:[#allocation0]]
  $region22: #{l1_loss.1} parent=0
    _
  %s5 = ssub.s32 1, %s3
  %s6 = scalar_select 0, %s5, %s3
  // Predicated region
  $region2: #{l1_loss.1} parent=0 // pred_check
    _
  $region3: #{l1_loss.1} parent=0 // pred_check_branch
    %8 = sbr.rel (0) target = $region5
  $region4: #{l1_loss.1} parent=0 // pred_region
    %s9 = sadd.s32 0, 0
    %p10 = scmp.lt.s32.totalorder %s9, 0
    %s11 = scalar_select %p10, %s9, 0
    %s12 = smul.u32 2, %s11
    %p13 = scmp.lt.s32.totalorder %s12, 1
    %s14 = scalar_select %p13, %s12, 1
    %s15 = smul.addr %s14, 8
    %s16 = scalar_lea.vmem %s0, %s15
    %s17 = sadd.s32 0, 0
    %p18 = scmp.lt.s32.totalorder %s17, 0
    %s19 = scalar_select %p18, %s17, 0
    %s20 = smul.u32 2, %s19
  $region5: #{l1_loss.1} parent=0 // pred_fallthru
    _
  // Predicated region
  $region6: #{l1_loss.1} parent=0 // pred_check
    _
  $region7: #{l1_loss.1} parent=0 // pred_check_branch
    %22 = sbr.rel (0) target = $region9
  $region8: #{l1_loss.1} parent=0 // pred_region
    %s23 = sadd.s32 0, 0
    %p24 = scmp.lt.s32.totalorder %s23, 0
    %s25 = scalar_select %p24, %s23, 0
    %s26 = smul.u32 2, %s25
    %p27 = scmp.lt.s32.totalorder %s26, 1
    %s28 = scalar_select %p27, %s26, 1
    %s29 = smul.addr %s28, 8
    %s30 = scalar_lea.vmem %s1, %s29
    %s31 = sadd.s32 0, 0
    %p32 = scmp.lt.s32.totalorder %s31, 0
    %s33 = scalar_select %p32, %s31, 0
    %s34 = smul.u32 2, %s33
  $region9: #{l1_loss.1} parent=0 // pred_fallthru
    _
  %s35 = sadd.s32 0, 0
  %p36 = scmp.lt.s32.totalorder %s35, 0
  %s37 = scalar_select %p36, %s35, 0
  %s38 = smul.u32 2, %s37
  %p39 = scmp.lt.s32.totalorder %s38, 1
  %s40 = scalar_select %p39, %s38, 1
  %s41 = smul.addr %s40, 8
  %s42 = scalar_lea.vmem %s0, %s41
  %s43 = sadd.s32 0, 0
  %p44 = scmp.lt.s32.totalorder %s43, 0
  %s45 = scalar_select %p44, %s43, 0
  %s46 = smul.u32 2, %s45
  %p47 = scmp.lt.s32.totalorder %s46, 1
  %s48 = scalar_select %p47, %s46, 1
  %s49 = smul.addr %s48, 8
  %s50 = scalar_lea.vmem %s1, %s49
  %s51 = sadd.s32 0, 0
  %p52 = scmp.lt.s32.totalorder %s51, 0
  %s53 = scalar_select %p52, %s51, 0
  %s54 = smul.u32 2, %s53
  %p55 = scmp.lt.s32.totalorder %s54, 1
  %s56 = scalar_select %p55, %s54, 1
  %s57 = smul.addr %s56, 8
  %s58 = scalar_lea.vmem %s0, %s57
  %s59 = sadd.s32 0, 0
  %p60 = scmp.lt.s32.totalorder %s59, 0
  %s61 = scalar_select %p60, %s59, 0
  %s62 = smul.u32 2, %s61
  %s63 = sadd.s32 0, 0
  %p64 = scmp.lt.s32.totalorder %s63, 0
  %s65 = scalar_select %p64, %s63, 0
  %s66 = smul.u32 2, %s65
  %p67 = scmp.lt.s32.totalorder %s66, 1
  %s68 = scalar_select %p67, %s66, 1
  %s69 = smul.addr %s68, 8
  %s70 = scalar_lea.vmem %s1, %s69
  %s71 = sadd.s32 0, 0
  %p72 = scmp.lt.s32.totalorder %s71, 0
  %s73 = scalar_select %p72, %s71, 0
  %s74 = smul.u32 2, %s73
  %p75 = scmp.eq.s32.totalorder 0, 0
  // Predicated region
  $region10: #{l1_loss.1} parent=0 // pred_check
    %p76 = pneg %p75
  $region11: #{l1_loss.1} parent=0 // pred_check_branch
    %78 = sbr.rel (%p76) target = $region13
  $region12: #{l1_loss.1} parent=0 // pred_region
    %79 = vst [vmem:[%s2] sm:$0xff] 0.0
  $region13: #{l1_loss.1} parent=0 // pred_fallthru
    _
  %s80 = sadd.s32 0, 0
  %s81 = smul.u32 %s80, 16
  %s82 = ssub.s32 16, %s81
  %v83 = vld [vmem:[%s58] sm:$0xff]
  %v84 = vld [vmem:[%s58 + $0x8] sm:$0xff]
  %v85 = vld [vmem:[%s70] sm:$0xff]
  %v86 = vld [vmem:[%s70 + $0x8] sm:$0xff]
  %v87 = vsub.f32 %v83, %v85
  %v88 = vsub.f32 %v84, %v86
  %v89 = vand.u32 2147483647, %v87
  %v90 = vand.u32 2147483647, %v88
  %v91 = vlaneseq
  %v92 = vshrl.u32 %v91, 7
  %v93 = vadd.s32 %v92, 8
  %v94 = vstv %s82
  %vm95 = vcmp.lt.s32.totalorder %v92, %v94
  %vm96 = vcmp.lt.s32.totalorder %v93, %v94
  %v97 = vsel %vm95, %v89, 0.0
  %v98 = vsel %vm96, %v90, 0.0
  %v99 = vadd.f32 %v97, %v98
  %v100 = vadd.f32 %v99, 0.0
  %v101 = vld [vmem:[%s2] sm:$0xff]
  %v102 = vadd.f32 %v101, %v100
  %103 = vst [vmem:[%s2] sm:$0xff] %v102
  // Predicated region
  $region14: #{l1_loss.1} parent=0 // pred_check
    _
  $region15: #{l1_loss.1} parent=0 // pred_check_branch
    %105 = sbr.rel (0) target = $region17
  $region16: #{l1_loss.1} parent=0 // pred_region
    _
  $region17: #{l1_loss.1} parent=0 // pred_fallthru
    _
  // Predicated region
  $region18: #{l1_loss.1} parent=0 // pred_check
    _
  $region19: #{l1_loss.1} parent=0 // pred_check_branch
    %107 = sbr.rel (0) target = $region21
  $region20: #{l1_loss.1} parent=0 // pred_region
    _
  $region21: #{l1_loss.1} parent=0 // pred_fallthru
    _

</llo_original>
